<compile_context>
chip_gen: v5e
topology: v5e:2x2
jax: 0.10.0
libtpu: 0.0.40
codegen_flags: <defaults>
</compile_context>

<pallas_src>
import functools
import math

import jax
import jax.numpy as jnp
from jax.experimental import pallas as pl
from jax.experimental.pallas import tpu as pltpu


def _conv_pos_enc_kernel(xp_ref, w_ref, b_ref, o_ref, *, k: int):
    """Depthwise kxk conv + bias + residual for one batch image.

    xp_ref: (1, H+2p, W+2p, C)  zero-padded input plane (channels-last)
    w_ref : (k*k, C)            depthwise taps, w[di*k+dj, c]
    b_ref : (1, C)              bias
    o_ref : (1, H, W, C)        output plane
    """
    Ho = o_ref.shape[1]
    Wo = o_ref.shape[2]
    pad = k // 2

    acc = jnp.zeros(o_ref.shape[1:], dtype=jnp.float32)
    for di in range(k):
        for dj in range(k):
            tap = xp_ref[0, di:di + Ho, dj:dj + Wo, :].astype(jnp.float32)
            acc = acc + tap * w_ref[di * k + dj, :].astype(jnp.float32)

    # residual: the un-padded center window of the padded input
    center = xp_ref[0, pad:pad + Ho, pad:pad + Wo, :].astype(jnp.float32)
    out = acc + b_ref[0, :].astype(jnp.float32) + center
    o_ref[0] = out.astype(o_ref.dtype)


@functools.partial(jax.jit, static_argnames=("k",))
def conv_pos_enc_pallas(x, w_tap, bias, k=3):
    """x: (B, N, C) with N a perfect square -> (B, N, C).

    w_tap: (k*k, C) depthwise weights, channels-last.  From a PyTorch
           nn.Conv2d(dim, dim, k, groups=dim) weight of shape (C, 1, k, k):
           w_tap = torch_w.reshape(C, k*k).T
    bias : (C,)
    """
    B, N, C = x.shape
    H = math.isqrt(N)
    assert H * H == N, f"{N} is not a square number"
    W = H
    pad = k // 2
    Hp, Wp = H + 2 * pad, W + 2 * pad

    feat = x.reshape(B, H, W, C)                              # channels-last
    xp = jnp.pad(feat, ((0, 0), (pad, pad), (pad, pad), (0, 0)))
    b2 = bias.reshape(1, C)

    itemsize = jnp.dtype(x.dtype).itemsize
    cost = pl.CostEstimate(
        flops=2 * B * H * W * C * (k * k + 1),                # conv MACs + bias/residual
        transcendentals=0,
        bytes_accessed=(xp.size + B * H * W * C + w_tap.size + bias.size) * itemsize,
    )

    kernel = functools.partial(_conv_pos_enc_kernel, k=k)

    out = pl.pallas_call(
        kernel,
        out_shape=jax.ShapeDtypeStruct((B, H, W, C), x.dtype),
        grid_spec=pltpu.PrefetchScalarGridSpec(
            num_scalar_prefetch=0,
            grid=(B,),
            in_specs=[
                pl.BlockSpec((1, Hp, Wp, C), lambda b: (b, 0, 0, 0)),  # padded plane
                pl.BlockSpec((k * k, C), lambda b: (0, 0)),            # taps (resident)
                pl.BlockSpec((1, C), lambda b: (0, 0)),                # bias (resident)
            ],
            out_specs=pl.BlockSpec((1, H, W, C), lambda b: (b, 0, 0, 0)),
        ),
        compiler_params=pltpu.CompilerParams(
            dimension_semantics=("parallel",),   # batch axis shards across TCs (v7x)
        ),
        cost_estimate=cost,
    )(xp, w_tap, b2)

    return out.reshape(B, N, C)


def _reference(x, w_tap, bias, k=3):
    """Independent pure-JAX reference via XLA's grouped convolution."""
    B, N, C = x.shape
    H = math.isqrt(N)
    W = H
    feat = x.reshape(B, H, W, C)
    rhs = w_tap.reshape(k, k, 1, C)  # HWIO, I = C/groups = 1
    conv = jax.lax.conv_general_dilated(
        feat, rhs,
        window_strides=(1, 1),
        padding="SAME",
        dimension_numbers=("NHWC", "HWIO", "NHWC"),
        feature_group_count=C,
    )
    out = conv + bias + feat
    return out.reshape(B, N, C)


if __name__ == "__main__":
    key = jax.random.PRNGKey(0)
    k_x, k_w, k_b = jax.random.split(key, 3)

    B = 2
    H = W = 8            # 8x8 token grid
    N = H * W            # 64 tokens
    C = 128              # lane-dense channel count
    K = 3                # conv kernel size

    x = jax.random.normal(k_x, (B, N, C), jnp.float32)

    # PyTorch nn.Conv2d(groups=dim) default init: U(-1/sqrt(fan_in), 1/sqrt(fan_in)),
    # fan_in = (C/groups) * k * k = k * k
    bound = 1.0 / math.sqrt(K * K)
    w_tap = jax.random.uniform(k_w, (K * K, C), jnp.float32, -bound, bound)
    bias = jax.random.uniform(k_b, (C,), jnp.float32, -bound, bound)

    out = conv_pos_enc_pallas(x, w_tap, bias, k=K)
    out = jax.block_until_ready(out)

    ref = _reference(x, w_tap, bias, k=K)
    assert out.shape == (B, N, C)
    assert jnp.allclose(out, ref, atol=1e-4, rtol=1e-4)

    print("KERNEL_OK")
</pallas_src>

<mosaic_0001>
module attributes {stable_mosaic.version = 11 : i64} {
  func.func @_conv_pos_enc_kernel(%arg0: i32, %arg1: memref<1x10x10x128xf32, #tpu.memory_space<vmem>>, %arg2: memref<9x128xf32, #tpu.memory_space<vmem>>, %arg3: memref<1x128xf32, #tpu.memory_space<vmem>>, %arg4: memref<1x8x8x128xf32, #tpu.memory_space<vmem>>) attributes {dimension_semantics = [#tpu.dimension_semantics<parallel>], iteration_bounds = array<i64: 2>, scalar_prefetch = 0 : i64, scratch_operands = 0 : i64, tpu.core_type = #tpu.core_type<tc>, window_params = [{transform_indices = @transform_0, window_bounds = array<i64: 1, 10, 10, 128>}, {pipeline_mode = #tpu.pipeline_mode<synchronous>, transform_indices = @transform_1, window_bounds = array<i64: 9, 128>}, {pipeline_mode = #tpu.pipeline_mode<synchronous>, transform_indices = @transform_2, window_bounds = array<i64: 1, 128>}, {transform_indices = @transform_3, window_bounds = array<i64: 1, 8, 8, 128>}]} {
    %cst = arith.constant 0.000000e+00 : f32
    %0 = vector.broadcast %cst : f32 to vector<8x8x128xf32>
    %c0 = arith.constant 0 : index
    %c0_0 = arith.constant 0 : index
    %c0_1 = arith.constant 0 : index
    %c0_2 = arith.constant 0 : index
    %1 = vector.load %arg1[%c0, %c0_0, %c0_1, %c0_2] : memref<1x10x10x128xf32, #tpu.memory_space<vmem>>, vector<1x8x8x128xf32>
    %2 = vector.shape_cast %1 : vector<1x8x8x128xf32> to vector<8x8x128xf32>
    %c0_3 = arith.constant 0 : index
    %c0_4 = arith.constant 0 : index
    %3 = vector.load %arg2[%c0_3, %c0_4] : memref<9x128xf32, #tpu.memory_space<vmem>>, vector<1x128xf32>
    %4 = vector.shape_cast %3 : vector<1x128xf32> to vector<128xf32>
    %5 = vector.shape_cast %4 : vector<128xf32> to vector<1x1x128xf32>
    %6 = vector.broadcast %5 : vector<1x1x128xf32> to vector<8x8x128xf32>
    %7 = arith.mulf %2, %6 : vector<8x8x128xf32>
    %8 = arith.addf %0, %7 : vector<8x8x128xf32>
    %c0_5 = arith.constant 0 : index
    %c0_6 = arith.constant 0 : index
    %c1 = arith.constant 1 : index
    %c0_7 = arith.constant 0 : index
    %9 = vector.load %arg1[%c0_5, %c0_6, %c1, %c0_7] : memref<1x10x10x128xf32, #tpu.memory_space<vmem>>, vector<1x8x8x128xf32>
    %10 = vector.shape_cast %9 : vector<1x8x8x128xf32> to vector<8x8x128xf32>
    %c1_8 = arith.constant 1 : index
    %c0_9 = arith.constant 0 : index
    %11 = vector.load %arg2[%c1_8, %c0_9] : memref<9x128xf32, #tpu.memory_space<vmem>>, vector<1x128xf32>
    %12 = vector.shape_cast %11 : vector<1x128xf32> to vector<128xf32>
    %13 = vector.shape_cast %12 : vector<128xf32> to vector<1x1x128xf32>
    %14 = vector.broadcast %13 : vector<1x1x128xf32> to vector<8x8x128xf32>
    %15 = arith.mulf %10, %14 : vector<8x8x128xf32>
    %16 = arith.addf %8, %15 : vector<8x8x128xf32>
    %c0_10 = arith.constant 0 : index
    %c0_11 = arith.constant 0 : index
    %c2 = arith.constant 2 : index
    %c0_12 = arith.constant 0 : index
    %17 = vector.load %arg1[%c0_10, %c0_11, %c2, %c0_12] : memref<1x10x10x128xf32, #tpu.memory_space<vmem>>, vector<1x8x8x128xf32>
    %18 = vector.shape_cast %17 : vector<1x8x8x128xf32> to vector<8x8x128xf32>
    %c2_13 = arith.constant 2 : index
    %c0_14 = arith.constant 0 : index
    %19 = vector.load %arg2[%c2_13, %c0_14] : memref<9x128xf32, #tpu.memory_space<vmem>>, vector<1x128xf32>
    %20 = vector.shape_cast %19 : vector<1x128xf32> to vector<128xf32>
    %21 = vector.shape_cast %20 : vector<128xf32> to vector<1x1x128xf32>
    %22 = vector.broadcast %21 : vector<1x1x128xf32> to vector<8x8x128xf32>
    %23 = arith.mulf %18, %22 : vector<8x8x128xf32>
    %24 = arith.addf %16, %23 : vector<8x8x128xf32>
    %c0_15 = arith.constant 0 : index
    %c1_16 = arith.constant 1 : index
    %c0_17 = arith.constant 0 : index
    %c0_18 = arith.constant 0 : index
    %25 = vector.load %arg1[%c0_15, %c1_16, %c0_17, %c0_18] : memref<1x10x10x128xf32, #tpu.memory_space<vmem>>, vector<1x8x8x128xf32>
    %26 = vector.shape_cast %25 : vector<1x8x8x128xf32> to vector<8x8x128xf32>
    %c3 = arith.constant 3 : index
    %c0_19 = arith.constant 0 : index
    %27 = vector.load %arg2[%c3, %c0_19] : memref<9x128xf32, #tpu.memory_space<vmem>>, vector<1x128xf32>
    %28 = vector.shape_cast %27 : vector<1x128xf32> to vector<128xf32>
    %29 = vector.shape_cast %28 : vector<128xf32> to vector<1x1x128xf32>
    %30 = vector.broadcast %29 : vector<1x1x128xf32> to vector<8x8x128xf32>
    %31 = arith.mulf %26, %30 : vector<8x8x128xf32>
    %32 = arith.addf %24, %31 : vector<8x8x128xf32>
    %c0_20 = arith.constant 0 : index
    %c1_21 = arith.constant 1 : index
    %c1_22 = arith.constant 1 : index
    %c0_23 = arith.constant 0 : index
    %33 = vector.load %arg1[%c0_20, %c1_21, %c1_22, %c0_23] : memref<1x10x10x128xf32, #tpu.memory_space<vmem>>, vector<1x8x8x128xf32>
    %34 = vector.shape_cast %33 : vector<1x8x8x128xf32> to vector<8x8x128xf32>
    %c4 = arith.constant 4 : index
    %c0_24 = arith.constant 0 : index
    %35 = vector.load %arg2[%c4, %c0_24] : memref<9x128xf32, #tpu.memory_space<vmem>>, vector<1x128xf32>
    %36 = vector.shape_cast %35 : vector<1x128xf32> to vector<128xf32>
    %37 = vector.shape_cast %36 : vector<128xf32> to vector<1x1x128xf32>
    %38 = vector.broadcast %37 : vector<1x1x128xf32> to vector<8x8x128xf32>
    %39 = arith.mulf %34, %38 : vector<8x8x128xf32>
    %40 = arith.addf %32, %39 : vector<8x8x128xf32>
    %c0_25 = arith.constant 0 : index
    %c1_26 = arith.constant 1 : index
    %c2_27 = arith.constant 2 : index
    %c0_28 = arith.constant 0 : index
    %41 = vector.load %arg1[%c0_25, %c1_26, %c2_27, %c0_28] : memref<1x10x10x128xf32, #tpu.memory_space<vmem>>, vector<1x8x8x128xf32>
    %42 = vector.shape_cast %41 : vector<1x8x8x128xf32> to vector<8x8x128xf32>
    %c5 = arith.constant 5 : index
    %c0_29 = arith.constant 0 : index
    %43 = vector.load %arg2[%c5, %c0_29] : memref<9x128xf32, #tpu.memory_space<vmem>>, vector<1x128xf32>
    %44 = vector.shape_cast %43 : vector<1x128xf32> to vector<128xf32>
    %45 = vector.shape_cast %44 : vector<128xf32> to vector<1x1x128xf32>
    %46 = vector.broadcast %45 : vector<1x1x128xf32> to vector<8x8x128xf32>
    %47 = arith.mulf %42, %46 : vector<8x8x128xf32>
    %48 = arith.addf %40, %47 : vector<8x8x128xf32>
    %c0_30 = arith.constant 0 : index
    %c2_31 = arith.constant 2 : index
    %c0_32 = arith.constant 0 : index
    %c0_33 = arith.constant 0 : index
    %49 = vector.load %arg1[%c0_30, %c2_31, %c0_32, %c0_33] : memref<1x10x10x128xf32, #tpu.memory_space<vmem>>, vector<1x8x8x128xf32>
    %50 = vector.shape_cast %49 : vector<1x8x8x128xf32> to vector<8x8x128xf32>
    %c6 = arith.constant 6 : index
    %c0_34 = arith.constant 0 : index
    %51 = vector.load %arg2[%c6, %c0_34] : memref<9x128xf32, #tpu.memory_space<vmem>>, vector<1x128xf32>
    %52 = vector.shape_cast %51 : vector<1x128xf32> to vector<128xf32>
    %53 = vector.shape_cast %52 : vector<128xf32> to vector<1x1x128xf32>
    %54 = vector.broadcast %53 : vector<1x1x128xf32> to vector<8x8x128xf32>
    %55 = arith.mulf %50, %54 : vector<8x8x128xf32>
    %56 = arith.addf %48, %55 : vector<8x8x128xf32>
    %c0_35 = arith.constant 0 : index
    %c2_36 = arith.constant 2 : index
    %c1_37 = arith.constant 1 : index
    %c0_38 = arith.constant 0 : index
    %57 = vector.load %arg1[%c0_35, %c2_36, %c1_37, %c0_38] : memref<1x10x10x128xf32, #tpu.memory_space<vmem>>, vector<1x8x8x128xf32>
    %58 = vector.shape_cast %57 : vector<1x8x8x128xf32> to vector<8x8x128xf32>
    %c7 = arith.constant 7 : index
    %c0_39 = arith.constant 0 : index
    %59 = vector.load %arg2[%c7, %c0_39] : memref<9x128xf32, #tpu.memory_space<vmem>>, vector<1x128xf32>
    %60 = vector.shape_cast %59 : vector<1x128xf32> to vector<128xf32>
    %61 = vector.shape_cast %60 : vector<128xf32> to vector<1x1x128xf32>
    %62 = vector.broadcast %61 : vector<1x1x128xf32> to vector<8x8x128xf32>
    %63 = arith.mulf %58, %62 : vector<8x8x128xf32>
    %64 = arith.addf %56, %63 : vector<8x8x128xf32>
    %c0_40 = arith.constant 0 : index
    %c2_41 = arith.constant 2 : index
    %c2_42 = arith.constant 2 : index
    %c0_43 = arith.constant 0 : index
    %65 = vector.load %arg1[%c0_40, %c2_41, %c2_42, %c0_43] : memref<1x10x10x128xf32, #tpu.memory_space<vmem>>, vector<1x8x8x128xf32>
    %66 = vector.shape_cast %65 : vector<1x8x8x128xf32> to vector<8x8x128xf32>
    %c8 = arith.constant 8 : index
    %c0_44 = arith.constant 0 : index
    %67 = vector.load %arg2[%c8, %c0_44] : memref<9x128xf32, #tpu.memory_space<vmem>>, vector<1x128xf32>
    %68 = vector.shape_cast %67 : vector<1x128xf32> to vector<128xf32>
    %69 = vector.shape_cast %68 : vector<128xf32> to vector<1x1x128xf32>
    %70 = vector.broadcast %69 : vector<1x1x128xf32> to vector<8x8x128xf32>
    %71 = arith.mulf %66, %70 : vector<8x8x128xf32>
    %72 = arith.addf %64, %71 : vector<8x8x128xf32>
    %c0_45 = arith.constant 0 : index
    %c1_46 = arith.constant 1 : index
    %c1_47 = arith.constant 1 : index
    %c0_48 = arith.constant 0 : index
    %73 = vector.load %arg1[%c0_45, %c1_46, %c1_47, %c0_48] : memref<1x10x10x128xf32, #tpu.memory_space<vmem>>, vector<1x8x8x128xf32>
    %74 = vector.shape_cast %73 : vector<1x8x8x128xf32> to vector<8x8x128xf32>
    %c0_49 = arith.constant 0 : index
    %c0_50 = arith.constant 0 : index
    %75 = vector.load %arg3[%c0_49, %c0_50] : memref<1x128xf32, #tpu.memory_space<vmem>>, vector<1x128xf32>
    %76 = vector.shape_cast %75 : vector<1x128xf32> to vector<128xf32>
    %77 = vector.shape_cast %76 : vector<128xf32> to vector<1x1x128xf32>
    %78 = vector.broadcast %77 : vector<1x1x128xf32> to vector<8x8x128xf32>
    %79 = arith.addf %72, %78 : vector<8x8x128xf32>
    %80 = arith.addf %79, %74 : vector<8x8x128xf32>
    %c0_51 = arith.constant 0 : index
    %c0_52 = arith.constant 0 : index
    %c0_53 = arith.constant 0 : index
    %c0_54 = arith.constant 0 : index
    %81 = vector.load %arg4[%c0_51, %c0_52, %c0_53, %c0_54] : memref<1x8x8x128xf32, #tpu.memory_space<vmem>>, vector<1x8x8x128xf32>
    %82 = vector.shape_cast %81 : vector<1x8x8x128xf32> to vector<8x8x128xf32>
    %83 = vector.shape_cast %80 : vector<8x8x128xf32> to vector<1x8x8x128xf32>
    tpu.vector_store %arg4[%c0_51, %c0_52, %c0_53, %c0_54], %83 {strides = array<i32>} : memref<1x8x8x128xf32, #tpu.memory_space<vmem>>, vector<1x8x8x128xf32>,
    return
  }
  func.func @transform_0(%arg0: i32) -> (i32, i32, i32, i32) {
    %c0_i32 = arith.constant 0 : i32
    %c0_i32_0 = arith.constant 0 : i32
    %c0_i32_1 = arith.constant 0 : i32
    %c0_i32_2 = arith.constant 0 : i32
    return %arg0, %c0_i32, %c0_i32_0, %c0_i32_1 : i32, i32, i32, i32
  }
  func.func @transform_1(%arg0: i32) -> (i32, i32) {
    %c0_i32 = arith.constant 0 : i32
    %c0_i32_0 = arith.constant 0 : i32
    %c0_i32_1 = arith.constant 0 : i32
    return %c0_i32, %c0_i32_0 : i32, i32
  }
  func.func @transform_2(%arg0: i32) -> (i32, i32) {
    %c0_i32 = arith.constant 0 : i32
    %c0_i32_0 = arith.constant 0 : i32
    %c0_i32_1 = arith.constant 0 : i32
    return %c0_i32, %c0_i32_0 : i32, i32
  }
  func.func @transform_3(%arg0: i32) -> (i32, i32, i32, i32) {
    %c0_i32 = arith.constant 0 : i32
    %c0_i32_0 = arith.constant 0 : i32
    %c0_i32_1 = arith.constant 0 : i32
    %c0_i32_2 = arith.constant 0 : i32
    return %arg0, %c0_i32, %c0_i32_0, %c0_i32_1 : i32, i32, i32, i32
  }
}

</mosaic_0001>

<llo_original>
// kernel: conv_pos_enc_pallas.1
$region0: #{conv_pos_enc_pallas.1}
  #allocation0 [shape = 'u32[]', space=smem, size = 0x4, offset = 0x4, fixed_abs, tag = 'smem constant byte address 0x4 - core index']
  #allocation1 [shape = 'u32[72,128]{1,0:T(1,128)}', space=vmem, size = 0x9000, scoped, tag = 'internal scratch']
  %s0 = inlined_call_operand.vmem [shape: f32[2,10,10,128], index: 0, kind: input, shape index: {}]
  %s1 = inlined_call_operand.vmem [shape: f32[9,128], index: 1, kind: input, shape index: {}]
  %s2 = inlined_call_operand.vmem [shape: f32[1,128], index: 2, kind: input, shape index: {}]
  %s3 = inlined_call_operand.hbm [shape: f32[2,8,8,128], index: 3, kind: output, shape index: {}]
  %s4 = sld [smem:[#allocation0]]
  $region45: #{conv_pos_enc_pallas.1} parent=0
    _
  %s6 = ssub.s32 1, %s4
  %s7 = scalar_select 0, %s6, %s4
  $region1: #{conv_pos_enc_pallas.1} parent=0
    #allocation2 [shape = 'u8[65536]{0}', space=vmem, size = 0x10000, scoped, tag = 'output window, operand 0']
    #allocation3 [shape = 's32[2]{0}', space=sflag, size = 0x8, scoped, tag = 'scoped memory for conv_pos_enc_pallas.1']
    %8 = vsyncpa [#allocation3], 0
    %s9 = scalar_lea.sflag [#allocation3], 1
    %10 = vsyncpa %s9, 0
    loop: start=0, step=1, limit=4
    $region2: #{conv_pos_enc_pallas.1} parent=1 // loop_pre_header
      _
    $region3: #{conv_pos_enc_pallas.1} parent=1 // loop_header
      %s12 = sphi 0, %s16
      %p13 = scmp.ge.s32.totalorder %s12, 4
      %s22 = sphi 0, %s24
      %s25 = sphi 0, %s22
      %s26 = sphi 0, %s25
      %s42 = sphi 0, %s26
      %s46 = sphi 0, %s46
      %s48 = sphi 0, %s46
      %s49 = sphi 0, %s48
      %s63 = sphi 0, %s49
      %s67 = sphi 0, %s67
      %s69 = sphi 0, %s67
      %s70 = sphi 0, %s69
      %s84 = sphi 0, %s70
      %s90 = sphi 0, %s92
      %s93 = sphi 0, %s90
      %s94 = sphi 0, %s93
      %s110 = sphi 0, %s94
    $region4: #{conv_pos_enc_pallas.1} parent=1 // loop_header_branch
      %15 = sbr.rel (%p13) target = $region8
    $region5: #{conv_pos_enc_pallas.1} parent=1 // loop_body
      %s17 = ssub.s32 %s12, 1
      %s18 = ssub.s32 %s12, 2
      %s19 = sadd.s32 %s12, 1
      %s20 = ssub.s32 %s12, %s19
      %p21 = scmp.eq.s32.totalorder %s20, 0
      %s23 = sadd.s32 %s22, 1
      %s24 = scalar_select %p21, %s22, %s23
      %p27 = pneg %p21
      %p28 = scmp.eq.s32.totalorder %s12, 1
      %p29 = por %p27, %p28
      %p30 = scmp.ne.s32.totalorder %s22, %s25
      %p31 = scmp.eq.s32.totalorder %s12, 0
      %p32 = por %p30, %p31
      %p33 = scmp.ne.s32.totalorder %s22, %s25
      %p34 = scmp.eq.s32.totalorder %s17, 1
      %p35 = por %p33, %p34
      %p36 = scmp.ne.s32.totalorder %s25, %s26
      %p37 = scmp.eq.s32.totalorder %s17, 0
      %p38 = por %p36, %p37
      %p39 = scmp.ne.s32.totalorder %s25, %s26
      %p40 = scmp.eq.s32.totalorder %s18, 1
      %p41 = por %p39, %p40
      %p43 = scmp.ne.s32.totalorder %s26, %s42
      %p44 = scmp.eq.s32.totalorder %s18, 0
      %p45 = por %p43, %p44
      %s47 = sadd.s32 %s46, 1
      %p50 = scmp.eq.s32.totalorder %s12, 1
      %p51 = scmp.ne.s32.totalorder %s46, %s48
      %p52 = scmp.eq.s32.totalorder %s12, 0
      %p53 = por %p51, %p52
      %p54 = scmp.ne.s32.totalorder %s46, %s48
      %p55 = scmp.eq.s32.totalorder %s17, 1
      %p56 = por %p54, %p55
      %p57 = scmp.ne.s32.totalorder %s48, %s49
      %p58 = scmp.eq.s32.totalorder %s17, 0
      %p59 = por %p57, %p58
      %p60 = scmp.ne.s32.totalorder %s48, %s49
      %p61 = scmp.eq.s32.totalorder %s18, 1
      %p62 = por %p60, %p61
      %p64 = scmp.ne.s32.totalorder %s49, %s63
      %p65 = scmp.eq.s32.totalorder %s18, 0
      %p66 = por %p64, %p65
      %s68 = sadd.s32 %s67, 1
      %p71 = scmp.eq.s32.totalorder %s12, 1
      %p72 = scmp.ne.s32.totalorder %s67, %s69
      %p73 = scmp.eq.s32.totalorder %s12, 0
      %p74 = por %p72, %p73
      %p75 = scmp.ne.s32.totalorder %s67, %s69
      %p76 = scmp.eq.s32.totalorder %s17, 1
      %p77 = por %p75, %p76
      %p78 = scmp.ne.s32.totalorder %s69, %s70
      %p79 = scmp.eq.s32.totalorder %s17, 0
      %p80 = por %p78, %p79
      %p81 = scmp.ne.s32.totalorder %s69, %s70
      %p82 = scmp.eq.s32.totalorder %s18, 1
      %p83 = por %p81, %p82
      %p85 = scmp.ne.s32.totalorder %s70, %s84
      %p86 = scmp.eq.s32.totalorder %s18, 0
      %p87 = por %p85, %p86
      %s88 = ssub.s32 %s12, %s19
      %p89 = scmp.eq.s32.totalorder %s88, 0
      %s91 = sadd.s32 %s90, 1
      %s92 = scalar_select %p89, %s90, %s91
      %p95 = pneg %p89
      %p96 = scmp.eq.s32.totalorder %s12, 1
      %p97 = por %p95, %p96
      %p98 = scmp.ne.s32.totalorder %s90, %s93
      %p99 = scmp.eq.s32.totalorder %s12, 0
      %p100 = por %p98, %p99
      %p101 = scmp.ne.s32.totalorder %s90, %s93
      %p102 = scmp.eq.s32.totalorder %s17, 1
      %p103 = por %p101, %p102
      %p104 = scmp.ne.s32.totalorder %s93, %s94
      %p105 = scmp.eq.s32.totalorder %s17, 0
      %p106 = por %p104, %p105
      %p107 = scmp.ne.s32.totalorder %s93, %s94
      %p108 = scmp.eq.s32.totalorder %s18, 1
      %p109 = por %p107, %p108
      %p111 = scmp.ne.s32.totalorder %s94, %s110
      %p112 = scmp.eq.s32.totalorder %s18, 0
      %p113 = por %p111, %p112
      %p114 = scmp.le.s32.totalorder 1, %s12
      %p115 = scmp.lt.s32.totalorder %s12, 3
      %p116 = pnand %p114, %p115
      %p117 = pneg %p116
      // Predicated region
      $region9: #{conv_pos_enc_pallas.1} parent=5 // pred_check
        _
      $region10: #{conv_pos_enc_pallas.1} parent=5 // pred_check_branch
        %119 = sbr.rel (%p116) target = $region12
      $region11: #{conv_pos_enc_pallas.1} parent=5 // pred_region
        %s120 = ssub.s32 %s12, 1
        // Predicated region
        $region13: #{conv_pos_enc_pallas.1} parent=11 // pred_check
          %p121 = pneg %p59
        $region14: #{conv_pos_enc_pallas.1} parent=11 // pred_check_branch
          %123 = sbr.rel (%p121) target = $region16
        $region15: #{conv_pos_enc_pallas.1} parent=11 // pred_region
          _
        $region16: #{conv_pos_enc_pallas.1} parent=11 // pred_fallthru
          _
        // Predicated region
        $region17: #{conv_pos_enc_pallas.1} parent=11 // pred_check
          %p124 = pneg %p80
        $region18: #{conv_pos_enc_pallas.1} parent=11 // pred_check_branch
          %126 = sbr.rel (%p124) target = $region20
        $region19: #{conv_pos_enc_pallas.1} parent=11 // pred_region
          _
        $region20: #{conv_pos_enc_pallas.1} parent=11 // pred_fallthru
          _
      $region12: #{conv_pos_enc_pallas.1} parent=5 // pred_fallthru
        _
      %p127 = scmp.lt.s32.totalorder %s12, 2
      // Predicated region
      $region21: #{conv_pos_enc_pallas.1} parent=5 // pred_check
        %p128 = pneg %p127
      $region22: #{conv_pos_enc_pallas.1} parent=5 // pred_check_branch
        %130 = sbr.rel (%p128) target = $region24
      $region23: #{conv_pos_enc_pallas.1} parent=5 // pred_region
        // Predicated region
        $region25: #{conv_pos_enc_pallas.1} parent=23 // pred_check
          %p131 = pneg %p32
        $region26: #{conv_pos_enc_pallas.1} parent=23 // pred_check_branch
          %133 = sbr.rel (%p131) target = $region28
        $region27: #{conv_pos_enc_pallas.1} parent=23 // pred_region
          %p134 = scmp.lt.s32.totalorder %s12, 1
          %s135 = scalar_select %p134, %s12, 1
          %s136 = smul.addr %s135, 20
          %s137 = smul.addr %s136, 8
          %s138 = scalar_lea.vmem %s0, %s137
        $region28: #{conv_pos_enc_pallas.1} parent=23 // pred_fallthru
          _
      $region24: #{conv_pos_enc_pallas.1} parent=5 // pred_fallthru
        _
      %p139 = scmp.le.s32.totalorder 1, %s12
      %p140 = scmp.lt.s32.totalorder %s12, 3
      %p141 = pnand %p139, %p140
      %p142 = pneg %p141
      // Predicated region
      $region29: #{conv_pos_enc_pallas.1} parent=5 // pred_check
        _
      $region30: #{conv_pos_enc_pallas.1} parent=5 // pred_check_branch
        %144 = sbr.rel (%p141) target = $region32
      $region31: #{conv_pos_enc_pallas.1} parent=5 // pred_region
        %s145 = ssub.s32 %s12, 1
        %p146 = scmp.lt.s32.totalorder %s17, 1
        %s147 = scalar_select %p146, %s17, 1
        %s148 = smul.addr %s147, 20
        %s149 = smul.addr %s148, 8
        %s150 = scalar_lea.vmem %s0, %s149
        %p151 = pneg %p38
        %p152 = pneg %p35
        %p153 = pneg %p59
        %p154 = pneg %p56
        %p155 = pneg %p80
        %p156 = pneg %p77
        %p157 = pneg %p106
        %p158 = pneg %p103
        %s159 = sand.u32 %s93, 1
        %s160 = scalar_lea.sflag [#allocation3], %s159
        %s161 = sand.u32 %s93, 1
        %s162 = smul.addr %s161, 64
        %s163 = scalar_lea.vmem [#allocation2], %s162
        %p164 = scmp.lt.s32.totalorder %s17, 1
        %s165 = scalar_select %p164, %s17, 1
        %s166 = smul.addr %s165, 20
        %s167 = smul.addr %s166, 8
        %s168 = scalar_lea.vmem %s0, %s167
        %v169 = vld [vmem:[%s168] sm:$0xff]
        %v170 = vld [vmem:[%s168 + $0x10] sm:$0xff]
        %v171 = vld [vmem:[%s168 + $0x20] sm:$0xff]
        %v172 = vld [vmem:[%s168 + $0x30] sm:$0xff]
        %v173 = vld [vmem:[%s168 + $0x40] sm:$0xff]
        %v174 = vld [vmem:[%s168 + $0x50] sm:$0xff]
        %v175 = vld [vmem:[%s168 + $0x60] sm:$0xff]
        %v176 = vld [vmem:[%s168 + $0x70] sm:$0xff]
        %v177 = vld [vmem:[%s1] sm:$0x1]
        %v178 = vperm.slane %v177, 0
        %v179 = vmul.f32 %v169, %v178
        %v180 = vmul.f32 %v170, %v178
        %v181 = vmul.f32 %v171, %v178
        %v182 = vmul.f32 %v172, %v178
        %v183 = vmul.f32 %v173, %v178
        %v184 = vmul.f32 %v174, %v178
        %v185 = vmul.f32 %v175, %v178
        %v186 = vmul.f32 %v176, %v178
        %v187 = vadd.f32 %v179, 0.0
        %v188 = vadd.f32 %v180, 0.0
        %v189 = vadd.f32 %v181, 0.0
        %v190 = vadd.f32 %v182, 0.0
        %v191 = vadd.f32 %v183, 0.0
        %v192 = vadd.f32 %v184, 0.0
        %v193 = vadd.f32 %v185, 0.0
        %v194 = vadd.f32 %v186, 0.0
        %v195 = vld [vmem:[%s168 + $0x1] sm:$0xff]
        %v196 = vld [vmem:[%s168 + $0x11] sm:$0xff]
        %v197 = vld [vmem:[%s168 + $0x21] sm:$0xff]
        %v198 = vld [vmem:[%s168 + $0x31] sm:$0xff]
        %v199 = vld [vmem:[%s168 + $0x41] sm:$0xff]
        %v200 = vld [vmem:[%s168 + $0x51] sm:$0xff]
        %v201 = vld [vmem:[%s168 + $0x61] sm:$0xff]
        %v202 = vld [vmem:[%s168 + $0x71] sm:$0xff]
        %v203 = vld [vmem:[%s1 + $0x1] sm:$0x1]
        %v204 = vperm.slane %v203, 0
        %v205 = vmul.f32 %v195, %v204
        %v206 = vmul.f32 %v196, %v204
        %v207 = vmul.f32 %v197, %v204
        %v208 = vmul.f32 %v198, %v204
        %v209 = vmul.f32 %v199, %v204
        %v210 = vmul.f32 %v200, %v204
        %v211 = vmul.f32 %v201, %v204
        %v212 = vmul.f32 %v202, %v204
        %v213 = vadd.f32 %v187, %v205
        %v214 = vadd.f32 %v188, %v206
        %v215 = vadd.f32 %v189, %v207
        %v216 = vadd.f32 %v190, %v208
        %v217 = vadd.f32 %v191, %v209
        %v218 = vadd.f32 %v192, %v210
        %v219 = vadd.f32 %v193, %v211
        %v220 = vadd.f32 %v194, %v212
        %v221 = vld [vmem:[%s168 + $0x2] sm:$0xff]
        %v222 = vld [vmem:[%s168 + $0x12] sm:$0xff]
        %v223 = vld [vmem:[%s168 + $0x22] sm:$0xff]
        %v224 = vld [vmem:[%s168 + $0x32] sm:$0xff]
        %v225 = vld [vmem:[%s168 + $0x42] sm:$0xff]
        %v226 = vld [vmem:[%s168 + $0x52] sm:$0xff]
        %v227 = vld [vmem:[%s168 + $0x62] sm:$0xff]
        %v228 = vld [vmem:[%s168 + $0x72] sm:$0xff]
        %v229 = vld [vmem:[%s1 + $0x2] sm:$0x1]
        %v230 = vperm.slane %v229, 0
        %v231 = vmul.f32 %v221, %v230
        %v232 = vmul.f32 %v222, %v230
        %v233 = vmul.f32 %v223, %v230
        %v234 = vmul.f32 %v224, %v230
        %v235 = vmul.f32 %v225, %v230
        %v236 = vmul.f32 %v226, %v230
        %v237 = vmul.f32 %v227, %v230
        %v238 = vmul.f32 %v228, %v230
        %v239 = vadd.f32 %v213, %v231
        %v240 = vadd.f32 %v214, %v232
        %v241 = vadd.f32 %v215, %v233
        %v242 = vadd.f32 %v216, %v234
        %v243 = vadd.f32 %v217, %v235
        %v244 = vadd.f32 %v218, %v236
        %v245 = vadd.f32 %v219, %v237
        %v246 = vadd.f32 %v220, %v238
        %s247 = scalar_lea.vmem %s168, 16
        %v248 = vld [vmem:[%s247] sm:$0xff]
        %v249 = vld [vmem:[%s247 + $0x10] sm:$0xff]
        %v250 = vld [vmem:[%s247 + $0x20] sm:$0xff]
        %v251 = vld [vmem:[%s247 + $0x30] sm:$0xff]
        %v252 = vld [vmem:[%s247 + $0x40] sm:$0xff]
        %v253 = vld [vmem:[%s247 + $0x50] sm:$0xff]
        %v254 = vld [vmem:[%s247 + $0x60] sm:$0xff]
        %v255 = vld [vmem:[%s247 + $0x70] sm:$0xff]
        %v256 = vld [vmem:[%s1 + $0x3] sm:$0x1]
        %v257 = vperm.slane %v256, 0
        %v258 = vmul.f32 %v248, %v257
        %v259 = vmul.f32 %v249, %v257
        %v260 = vmul.f32 %v250, %v257
        %v261 = vmul.f32 %v251, %v257
        %v262 = vmul.f32 %v252, %v257
        %v263 = vmul.f32 %v253, %v257
        %v264 = vmul.f32 %v254, %v257
        %v265 = vmul.f32 %v255, %v257
        %v266 = vadd.f32 %v239, %v258
        %v267 = vadd.f32 %v240, %v259
        %v268 = vadd.f32 %v241, %v260
        %v269 = vadd.f32 %v242, %v261
        %v270 = vadd.f32 %v243, %v262
        %v271 = vadd.f32 %v244, %v263
        %v272 = vadd.f32 %v245, %v264
        %v273 = vadd.f32 %v246, %v265
        %v274 = vld [vmem:[%s247 + $0x1] sm:$0xff]
        %v275 = vld [vmem:[%s247 + $0x11] sm:$0xff]
        %v276 = vld [vmem:[%s247 + $0x21] sm:$0xff]
        %v277 = vld [vmem:[%s247 + $0x31] sm:$0xff]
        %v278 = vld [vmem:[%s247 + $0x41] sm:$0xff]
        %v279 = vld [vmem:[%s247 + $0x51] sm:$0xff]
        %v280 = vld [vmem:[%s247 + $0x61] sm:$0xff]
        %v281 = vld [vmem:[%s247 + $0x71] sm:$0xff]
        %v282 = vld [vmem:[%s1 + $0x4] sm:$0x1]
        %v283 = vperm.slane %v282, 0
        %v284 = vmul.f32 %v274, %v283
        %v285 = vmul.f32 %v275, %v283
        %v286 = vmul.f32 %v276, %v283
        %v287 = vmul.f32 %v277, %v283
        %v288 = vmul.f32 %v278, %v283
        %v289 = vmul.f32 %v279, %v283
        %v290 = vmul.f32 %v280, %v283
        %v291 = vmul.f32 %v281, %v283
        %v292 = vadd.f32 %v266, %v284
        %v293 = vadd.f32 %v267, %v285
        %v294 = vadd.f32 %v268, %v286
        %v295 = vadd.f32 %v269, %v287
        %v296 = vadd.f32 %v270, %v288
        %v297 = vadd.f32 %v271, %v289
        %v298 = vadd.f32 %v272, %v290
        %v299 = vadd.f32 %v273, %v291
        %v300 = vld [vmem:[%s247 + $0x2] sm:$0xff]
        %v301 = vld [vmem:[%s247 + $0x12] sm:$0xff]
        %v302 = vld [vmem:[%s247 + $0x22] sm:$0xff]
        %v303 = vld [vmem:[%s247 + $0x32] sm:$0xff]
        %v304 = vld [vmem:[%s247 + $0x42] sm:$0xff]
        %v305 = vld [vmem:[%s247 + $0x52] sm:$0xff]
        %v306 = vld [vmem:[%s247 + $0x62] sm:$0xff]
        %v307 = vld [vmem:[%s247 + $0x72] sm:$0xff]
        %v308 = vld [vmem:[%s1 + $0x5] sm:$0x1]
        %v309 = vperm.slane %v308, 0
        %v310 = vmul.f32 %v300, %v309
        %v311 = vmul.f32 %v301, %v309
        %v312 = vmul.f32 %v302, %v309
        %v313 = vmul.f32 %v303, %v309
        %v314 = vmul.f32 %v304, %v309
        %v315 = vmul.f32 %v305, %v309
        %v316 = vmul.f32 %v306, %v309
        %v317 = vmul.f32 %v307, %v309
        %v318 = vadd.f32 %v292, %v310
        %v319 = vadd.f32 %v293, %v311
        %v320 = vadd.f32 %v294, %v312
        %v321 = vadd.f32 %v295, %v313
        %v322 = vadd.f32 %v296, %v314
        %v323 = vadd.f32 %v297, %v315
        %v324 = vadd.f32 %v298, %v316
        %v325 = vadd.f32 %v299, %v317
        %s326 = scalar_lea.vmem %s168, 32
        %v327 = vld [vmem:[%s326] sm:$0xff]
        %v328 = vld [vmem:[%s326 + $0x10] sm:$0xff]
        %v329 = vld [vmem:[%s326 + $0x20] sm:$0xff]
        %v330 = vld [vmem:[%s326 + $0x30] sm:$0xff]
        %v331 = vld [vmem:[%s326 + $0x40] sm:$0xff]
        %v332 = vld [vmem:[%s326 + $0x50] sm:$0xff]
        %v333 = vld [vmem:[%s326 + $0x60] sm:$0xff]
        %v334 = vld [vmem:[%s326 + $0x70] sm:$0xff]
        %v335 = vld [vmem:[%s1 + $0x6] sm:$0x1]
        %v336 = vperm.slane %v335, 0
        %v337 = vmul.f32 %v327, %v336
        %v338 = vmul.f32 %v328, %v336
        %v339 = vmul.f32 %v329, %v336
        %v340 = vmul.f32 %v330, %v336
        %v341 = vmul.f32 %v331, %v336
        %v342 = vmul.f32 %v332, %v336
        %v343 = vmul.f32 %v333, %v336
        %v344 = vmul.f32 %v334, %v336
        %v345 = vadd.f32 %v318, %v337
        %v346 = vadd.f32 %v319, %v338
        %v347 = vadd.f32 %v320, %v339
        %v348 = vadd.f32 %v321, %v340
        %v349 = vadd.f32 %v322, %v341
        %v350 = vadd.f32 %v323, %v342
        %v351 = vadd.f32 %v324, %v343
        %v352 = vadd.f32 %v325, %v344
        %v353 = vld [vmem:[%s326 + $0x1] sm:$0xff]
        %v354 = vld [vmem:[%s326 + $0x11] sm:$0xff]
        %v355 = vld [vmem:[%s326 + $0x21] sm:$0xff]
        %v356 = vld [vmem:[%s326 + $0x31] sm:$0xff]
        %v357 = vld [vmem:[%s326 + $0x41] sm:$0xff]
        %v358 = vld [vmem:[%s326 + $0x51] sm:$0xff]
        %v359 = vld [vmem:[%s326 + $0x61] sm:$0xff]
        %v360 = vld [vmem:[%s326 + $0x71] sm:$0xff]
        %v361 = vld [vmem:[%s1 + $0x7] sm:$0x1]
        %v362 = vperm.slane %v361, 0
        %v363 = vmul.f32 %v353, %v362
        %v364 = vmul.f32 %v354, %v362
        %v365 = vmul.f32 %v355, %v362
        %v366 = vmul.f32 %v356, %v362
        %v367 = vmul.f32 %v357, %v362
        %v368 = vmul.f32 %v358, %v362
        %v369 = vmul.f32 %v359, %v362
        %v370 = vmul.f32 %v360, %v362
        %v371 = vadd.f32 %v345, %v363
        %v372 = vadd.f32 %v346, %v364
        %v373 = vadd.f32 %v347, %v365
        %v374 = vadd.f32 %v348, %v366
        %v375 = vadd.f32 %v349, %v367
        %v376 = vadd.f32 %v350, %v368
        %v377 = vadd.f32 %v351, %v369
        %v378 = vadd.f32 %v352, %v370
        %v379 = vld [vmem:[%s326 + $0x2] sm:$0xff]
        %v380 = vld [vmem:[%s326 + $0x12] sm:$0xff]
        %v381 = vld [vmem:[%s326 + $0x22] sm:$0xff]
        %v382 = vld [vmem:[%s326 + $0x32] sm:$0xff]
        %v383 = vld [vmem:[%s326 + $0x42] sm:$0xff]
        %v384 = vld [vmem:[%s326 + $0x52] sm:$0xff]
        %v385 = vld [vmem:[%s326 + $0x62] sm:$0xff]
        %v386 = vld [vmem:[%s326 + $0x72] sm:$0xff]
        %v387 = vld [vmem:[%s1 + $0x8] sm:$0x1]
        %v388 = vperm.slane %v387, 0
        %v389 = vmul.f32 %v379, %v388
        %v390 = vmul.f32 %v380, %v388
        %v391 = vmul.f32 %v381, %v388
        %v392 = vmul.f32 %v382, %v388
        %v393 = vmul.f32 %v383, %v388
        %v394 = vmul.f32 %v384, %v388
        %v395 = vmul.f32 %v385, %v388
        %v396 = vmul.f32 %v386, %v388
        %v397 = vadd.f32 %v371, %v389
        %v398 = vadd.f32 %v372, %v390
        %v399 = vadd.f32 %v373, %v391
        %v400 = vadd.f32 %v374, %v392
        %v401 = vadd.f32 %v375, %v393
        %v402 = vadd.f32 %v376, %v394
        %v403 = vadd.f32 %v377, %v395
        %v404 = vadd.f32 %v378, %v396
        %v405 = vld [vmem:[%s2] sm:$0x1]
        %v407 = vperm.slane %v405, 0
        %v409 = vadd.f32 %v397, %v407
        %v410 = vadd.f32 %v398, %v407
        %v411 = vadd.f32 %v399, %v407
        %v412 = vadd.f32 %v400, %v407
        %v413 = vadd.f32 %v401, %v407
        %v414 = vadd.f32 %v402, %v407
        %v415 = vadd.f32 %v403, %v407
        %v416 = vadd.f32 %v404, %v407
        %v417 = vadd.f32 %v409, %v274
        %v418 = vadd.f32 %v410, %v275
        %v419 = vadd.f32 %v411, %v276
        %v420 = vadd.f32 %v412, %v277
        %v421 = vadd.f32 %v413, %v278
        %v422 = vadd.f32 %v414, %v279
        %v423 = vadd.f32 %v415, %v280
        %v424 = vadd.f32 %v416, %v281
        %425 = vst [vmem:[%s163] sm:$0xff] %v417
        %426 = vst [vmem:[%s163 + $0x8] sm:$0xff] %v418
        %427 = vst [vmem:[%s163 + $0x10] sm:$0xff] %v419
        %428 = vst [vmem:[%s163 + $0x18] sm:$0xff] %v420
        %429 = vst [vmem:[%s163 + $0x20] sm:$0xff] %v421
        %430 = vst [vmem:[%s163 + $0x28] sm:$0xff] %v422
        %431 = vst [vmem:[%s163 + $0x30] sm:$0xff] %v423
        %432 = vst [vmem:[%s163 + $0x38] sm:$0xff] %v424
        %s433 = sand.u32 %s93, 1
        %s434 = scalar_lea.sflag [#allocation3], %s433
        %s435 = sand.u32 %s93, 1
        %s436 = smul.addr %s435, 64
        %s437 = scalar_lea.vmem [#allocation2], %s436
        // Predicated region
        $region33: #{conv_pos_enc_pallas.1} parent=31 // pred_check
          %p438 = pneg %p103
        $region34: #{conv_pos_enc_pallas.1} parent=31 // pred_check_branch
          %440 = sbr.rel (%p438) target = $region36
        $region35: #{conv_pos_enc_pallas.1} parent=31 // pred_region
          %442 = vsyncadd %s434, 0
          %s443 = smul.addr %s17, 8
          %s444 = smul.addr %s443, 8
          %s445 = scalar_lea.hbm %s3, %s444
          %s446 = sshll.u32 %s437, 4
          %s447 = int_to_ptr.vmem [resolvable:$true] %s446
          %s448 = sshll.u32 %s445, 4
          %s449 = int_to_ptr.hbm [resolvable:$true] %s448
          %454 = dma.vmem_to_hbm [thread:$0]  %s447, 1024, %s449, %s434, 128, 128, 8
        $region36: #{conv_pos_enc_pallas.1} parent=31 // pred_fallthru
          _
      $region32: #{conv_pos_enc_pallas.1} parent=5 // pred_fallthru
        _
      %p455 = scmp.le.s32.totalorder 2, %s12
      // Predicated region
      $region37: #{conv_pos_enc_pallas.1} parent=5 // pred_check
        %p456 = pneg %p455
      $region38: #{conv_pos_enc_pallas.1} parent=5 // pred_check_branch
        %458 = sbr.rel (%p456) target = $region40
      $region39: #{conv_pos_enc_pallas.1} parent=5 // pred_region
        %s459 = ssub.s32 %s12, 2
        // Predicated region
        $region41: #{conv_pos_enc_pallas.1} parent=39 // pred_check
          %p460 = pneg %p109
        $region42: #{conv_pos_enc_pallas.1} parent=39 // pred_check_branch
          %462 = sbr.rel (%p460) target = $region44
        $region43: #{conv_pos_enc_pallas.1} parent=39 // pred_region
          %s463 = sand.u32 %s94, 1
          %s464 = scalar_lea.sflag [#allocation3], %s463
          %s465 = sand.u32 %s94, 1
          %s466 = smul.addr %s465, 64
          %s467 = scalar_lea.vmem [#allocation2], %s466
          %469 = dma.done %s464, 1024
        $region44: #{conv_pos_enc_pallas.1} parent=39 // pred_fallthru
          _
      $region40: #{conv_pos_enc_pallas.1} parent=5 // pred_fallthru
        _
    $region6: #{conv_pos_enc_pallas.1} parent=1 // loop_footer
      %s16 = sadd.s32 1, %s12
    $region7: #{conv_pos_enc_pallas.1} parent=1 // loop_footer_branch
      %11 = sbr.rel target = $region3
    $region8: #{conv_pos_enc_pallas.1} parent=1 // loop_exit
      _
    %470 = vsyncpa [#allocation3], 1
    %s471 = scalar_lea.sflag [#allocation3], 1
    %472 = vsyncpa %s471, 1

</llo_original>
